<compile_context>
chip_gen: v7x
topology: tpu7x:2x2x1
jax: 0.10.0
libtpu: 0.0.40
codegen_flags: <defaults>
</compile_context>

<pallas_src>
import numpy as np
import jax
import jax.numpy as jnp
from jax.experimental import pallas as pl
from jax.experimental.pallas import tpu as pltpu


def _round_up(x, m):
    return (x + m - 1) // m * m


# ------------------------------ Pallas kernel --------------------------------

def _stft_se_mask_kernel(frames_ref, basis_ref, w1_ref, b1_ref, w2_ref, b2_ref,
                         mask_ref):
    # frames_ref: [tile_m, n_fft] bf16   (windowing folded into the basis)
    # basis_ref : [n_fft, 2*Fp]   bf16   ([win*cos | -win*sin], F zero-padded to Fp)
    # w1: [Fp, Hp] bf16, b1: [1, Hp] f32, w2: [Hp, Fp] bf16, b2: [1, Fp] f32
    # mask_ref  : [tile_m, Fp]    bf16   (lane-dense, half-width output store)
    Fp = w2_ref.shape[1]

    # One wide MXU matmul produces real & imaginary parts together.
    y = jnp.dot(frames_ref[...], basis_ref[...],
                preferred_element_type=jnp.float32)           # [tile_m, 2*Fp]
    re = y[:, :Fp]
    im = y[:, Fp:]

    # 'logmag': log(|X| + 1e-8) ~= 0.5 * log(re^2 + im^2 + 1e-16)
    # (single EUP transcendental instead of sqrt+log; f32 elementwise -> v5e safe)
    logmag = 0.5 * jnp.log(re * re + im * im + 1e-16)

    # SENetv10 stand-in (target='mask'): Linear -> ReLU -> Linear -> Sigmoid.
    # Padded freq lanes hit zero rows of w1, so their garbage logmag is inert.
    h = jnp.dot(logmag.astype(jnp.bfloat16), w1_ref[...],
                preferred_element_type=jnp.float32) + b1_ref[...]
    h = jnp.maximum(h, 0.0)
    m = jnp.dot(h.astype(jnp.bfloat16), w2_ref[...],
                preferred_element_type=jnp.float32) + b2_ref[...]
    # Sigmoid in f32 (v5e-safe), stored as bf16: halves the dominant HBM write.
    mask_ref[...] = jax.nn.sigmoid(m).astype(jnp.bfloat16)


# ------------------------------ Pallas wrapper --------------------------------

def stft_se_mask(frames, basis, w1, b1, w2, b2, tile_m, vmem_limit_bytes):
    M, n_fft = frames.shape
    Fp2 = basis.shape[1]
    Hp = w1.shape[1]
    Fp = w2.shape[1]
    assert M % tile_m == 0 and Fp2 == 2 * Fp

    return pl.pallas_call(
        _stft_se_mask_kernel,
        out_shape=jax.ShapeDtypeStruct((M, Fp), jnp.bfloat16),
        grid_spec=pltpu.PrefetchScalarGridSpec(
            num_scalar_prefetch=0,
            grid=(M // tile_m,),
            in_specs=[
                pl.BlockSpec((tile_m, n_fft), lambda i: (i, 0)),
                # Loop-invariant operands: constant block index -> Mosaic keeps
                # the revisited block resident (no per-step re-DMA). Their VMEM
                # footprint is ~100 KB, negligible next to the row tiles.
                pl.BlockSpec((n_fft, Fp2), lambda i: (0, 0)),
                pl.BlockSpec((Fp, Hp), lambda i: (0, 0)),
                pl.BlockSpec((1, Hp), lambda i: (0, 0)),
                pl.BlockSpec((Hp, Fp), lambda i: (0, 0)),
                pl.BlockSpec((1, Fp), lambda i: (0, 0)),
            ],
            out_specs=pl.BlockSpec((tile_m, Fp), lambda i: (i, 0)),
        ),
        compiler_params=pltpu.CompilerParams(
            # Row tiles are independent -> shard across TensorCores (v7x megacore).
            dimension_semantics=("parallel",),
            vmem_limit_bytes=vmem_limit_bytes,
        ),
    )(frames, basis, w1, b1, w2, b2)


def _pick_tile_m(M, cap=2048):
    """Row tile: multiple of 16 (bf16 sublane packing), capped at 2048 (working
    set a few MiB), while keeping >=4 grid steps when M allows (>=2 for small M)
    so the 'parallel' axis can split across both v7x TensorCores and still
    pipeline; big tiles amortize the ~0.35 us/step overhead."""
    if M <= 16:
        return 16
    steps = 4 if M >= 64 else 2
    t = (M // steps) // 16 * 16
    return max(16, min(t, cap))


def _vmem_limit_bytes(tile_m, n_fft, Fp, Hp):
    """Honest double-buffered footprint + headroom (no fixed 32-48 MiB band);
    a few MiB even at tile_m=2048, comfortably inside v7x's 64 MiB/TC."""
    est = 0
    est += 2 * tile_m * n_fft * 2          # frames (bf16, double-buffered)
    est += 2 * tile_m * Fp * 2             # mask out (bf16, double-buffered)
    est += 2 * (n_fft * 2 * Fp) * 2        # basis (bf16, 2 buffers)
    est += 2 * (Fp * Hp + Hp * Fp) * 2     # w1, w2 (bf16, 2 buffers)
    est += 2 * (Hp + Fp) * 4               # b1, b2
    est += tile_m * (2 * Fp + Fp + Hp + Fp) * 4   # in-kernel f32 temporaries
    est += tile_m * (Fp + Hp) * 2                 # bf16 casts of logmag / h
    return min(48 * 1024 * 1024, max(16 * 1024 * 1024, int(est * 1.5) + (2 << 20)))


# --------------------------------- Pipeline -----------------------------------

class SePiplineJAX:
    """JAX/Pallas equivalent of SePipline (version='v11'-like, stft_type='torch',
    transform_type='logmag', target='mask'), forward with train=True."""

    def __init__(self, n_fft, hop_len, win_len, chunk_size, hidden, key):
        assert win_len == n_fft, "simplified: win_len must equal n_fft"
        self.n_fft = n_fft
        self.hop_len = hop_len
        self.win_len = win_len
        self.chunk_size = chunk_size
        self.F = n_fft // 2 + 1
        self.Fp = _round_up(self.F, 128)     # lane-dense padded frequency axis
        self.Hp = _round_up(hidden, 128)     # lane-dense padded hidden axis

        # Real-DFT basis with the periodic Hann window folded in; cos & sin
        # concatenated into one wide [n_fft, 2*Fp] matrix (single MXU matmul).
        n = np.arange(n_fft)[:, None].astype(np.float64)
        k = np.arange(self.F)[None, :].astype(np.float64)
        ang = 2.0 * np.pi * n * k / n_fft
        hann = 0.5 - 0.5 * np.cos(2.0 * np.pi * np.arange(win_len) / win_len)
        cos_w = hann[:, None] * np.cos(ang)
        sin_w = hann[:, None] * (-np.sin(ang))
        basis = np.zeros((n_fft, 2 * self.Fp), dtype=np.float32)
        basis[:, :self.F] = cos_w
        basis[:, self.Fp:self.Fp + self.F] = sin_w
        self.basis = jnp.asarray(basis, dtype=jnp.bfloat16)

        # SENetv10 stand-in parameters (freq-MLP mask head); zero padding in the
        # extra rows/cols keeps the padded lanes inert.
        k1, k2 = jax.random.split(key)
        w1 = jax.random.normal(k1, (self.F, hidden), jnp.float32) / np.sqrt(self.F)
        w2 = jax.random.normal(k2, (hidden, self.F), jnp.float32) / np.sqrt(hidden)
        self.w1 = (jnp.zeros((self.Fp, self.Hp), jnp.float32)
                   .at[:self.F, :hidden].set(w1).astype(jnp.bfloat16))
        self.b1 = jnp.zeros((1, self.Hp), jnp.float32)
        self.w2 = (jnp.zeros((self.Hp, self.Fp), jnp.float32)
                   .at[:hidden, :self.F].set(w2).astype(jnp.bfloat16))
        self.b2 = jnp.zeros((1, self.Fp), jnp.float32)

        # jit the whole forward so framing / cast / pad / slice / transpose fuse
        # with each other instead of dispatching as separate XLA executables.
        self._forward_jit = jax.jit(self._forward)

    def _frame(self, dt):
        # dt: [B, T] -> frames [B*n_frames, n_fft]  (center=False framing).
        # Built from hop-strided reshape + slices + concat: no XLA gather.
        B, T = dt.shape
        hop, win = self.hop_len, self.win_len
        n_frames = (T - win) // hop + 1
        if win % hop == 0:
            r = win // hop
            need = (n_frames - 1 + r) * hop
            blocks = dt[:, :need].reshape(B, n_frames - 1 + r, hop)
            frames = jnp.concatenate(
                [blocks[:, j:j + n_frames, :] for j in range(r)], axis=-1)
        else:
            idx = (hop * np.arange(n_frames)[:, None] + np.arange(win)[None, :])
            frames = dt[:, idx]
        return frames.reshape(B * n_frames, win), B, n_frames

    def _forward(self, dt):
        frames, B, n_frames = self._frame(dt)
        M = frames.shape[0]

        tile_m = _pick_tile_m(M)
        M_pad = _round_up(M, tile_m)
        frames = frames.astype(jnp.bfloat16)              # bf16 MXU operands
        if M_pad != M:
            frames = jnp.pad(frames, ((0, M_pad - M), (0, 0)))

        vmem_limit = _vmem_limit_bytes(tile_m, self.n_fft, self.Fp, self.Hp)

        # stft(logmag) + SENetv10-style mask head — one fused Pallas kernel.
        mask = stft_se_mask(frames, self.basis, self.w1, self.b1, self.w2,
                            self.b2, tile_m, vmem_limit)   # [M_pad, Fp] bf16

        # chunk (ChunkDatav3-like, target='mask'): [B, n_chunks, F, chunk_size].
        # Slice, reshape, transpose and the final f32 up-cast operate on the
        # small bf16 mask and fuse into one XLA op under jit.
        assert n_frames % self.chunk_size == 0
        n_chunks = n_frames // self.chunk_size
        mask = mask[:M, :self.F]                           # drop row/lane padding
        mask = mask.reshape(B, n_chunks, self.chunk_size, self.F)
        mask = jnp.transpose(mask, (0, 1, 3, 2)).astype(jnp.float32)
        return mask

    def __call__(self, dt, train=True):
        out = self._forward_jit(dt)
        if not train:
            # TODO(synk): torch_istft reconstruction path (train=False) not implemented.
            pass
        return out


# ----------------------------------- main -------------------------------------

if __name__ == "__main__":
    key = jax.random.PRNGKey(0)
    k_in, k_param = jax.random.split(key)

    B = 2
    n_fft = 64
    hop_len = 32
    win_len = 64
    chunk_size = 8
    hidden = 32
    n_frames = 16                                    # 2 chunks of 8 frames
    T = hop_len * (n_frames - 1) + win_len           # 544 samples

    dt = jax.random.normal(k_in, (B, T), dtype=jnp.float32)

    pipe = SePiplineJAX(n_fft=n_fft, hop_len=hop_len, win_len=win_len,
                        chunk_size=chunk_size, hidden=hidden, key=k_param)

    out = pipe(dt, train=True)
    out = jax.block_until_ready(out)

    assert out.shape == (B, n_frames // chunk_size, n_fft // 2 + 1, chunk_size)
    assert out.dtype == jnp.float32
    assert bool(jnp.all(jnp.isfinite(out)))
    assert bool(jnp.all((out >= 0.0) & (out <= 1.0)))   # sigmoid mask range
    print("KERNEL_OK")
</pallas_src>

<mosaic_0001>
module attributes {stable_mosaic.version = 11 : i64} {
  func.func @_stft_se_mask_kernel(%arg0: i32, %arg1: memref<16x64xbf16, #tpu.memory_space<vmem>>, %arg2: memref<64x256xbf16, #tpu.memory_space<vmem>>, %arg3: memref<128x128xbf16, #tpu.memory_space<vmem>>, %arg4: memref<1x128xf32, #tpu.memory_space<vmem>>, %arg5: memref<128x128xbf16, #tpu.memory_space<vmem>>, %arg6: memref<1x128xf32, #tpu.memory_space<vmem>>, %arg7: memref<16x128xbf16, #tpu.memory_space<vmem>>) attributes {dimension_semantics = [#tpu.dimension_semantics<parallel>], iteration_bounds = array<i64: 2>, scalar_prefetch = 0 : i64, scratch_operands = 0 : i64, tpu.core_type = #tpu.core_type<tc>, window_params = [{transform_indices = @transform_0, window_bounds = array<i64: 16, 64>}, {pipeline_mode = #tpu.pipeline_mode<synchronous>, transform_indices = @transform_1, window_bounds = array<i64: 64, 256>}, {pipeline_mode = #tpu.pipeline_mode<synchronous>, transform_indices = @transform_2, window_bounds = array<i64: 128, 128>}, {pipeline_mode = #tpu.pipeline_mode<synchronous>, transform_indices = @transform_3, window_bounds = array<i64: 1, 128>}, {pipeline_mode = #tpu.pipeline_mode<synchronous>, transform_indices = @transform_4, window_bounds = array<i64: 128, 128>}, {pipeline_mode = #tpu.pipeline_mode<synchronous>, transform_indices = @transform_5, window_bounds = array<i64: 1, 128>}, {transform_indices = @transform_6, window_bounds = array<i64: 16, 128>}]} {
    %c0 = arith.constant 0 : index
    %c0_0 = arith.constant 0 : index
    %0 = vector.load %arg1[%c0, %c0_0] : memref<16x64xbf16, #tpu.memory_space<vmem>>, vector<16x64xbf16>
    %c0_1 = arith.constant 0 : index
    %c0_2 = arith.constant 0 : index
    %1 = vector.load %arg2[%c0_1, %c0_2] : memref<64x256xbf16, #tpu.memory_space<vmem>>, vector<64x256xbf16>
    %cst = arith.constant dense<0.000000e+00> : vector<16x256xf32>
    %2 = tpu.matmul %0, %1, %cst {dimension_numbers = #tpu.dot_dimension_numbers<[1], [0], [0], [1], [0, 0, 1, 1], [], []>} : vector<16x64xbf16>, vector<64x256xbf16>, vector<16x256xf32> -> vector<16x256xf32>
    %3 = vector.extract_strided_slice %2 {offsets = [0, 0], sizes = [16, 128], strides = [1, 1]} : vector<16x256xf32> to vector<16x128xf32>
    %4 = vector.extract_strided_slice %2 {offsets = [0, 128], sizes = [16, 128], strides = [1, 1]} : vector<16x256xf32> to vector<16x128xf32>
    %5 = arith.mulf %3, %3 : vector<16x128xf32>
    %6 = arith.mulf %4, %4 : vector<16x128xf32>
    %7 = arith.addf %5, %6 : vector<16x128xf32>
    %cst_3 = arith.constant 1.000000e-16 : f32
    %8 = vector.broadcast %cst_3 : f32 to vector<16x128xf32>
    %9 = arith.addf %7, %8 : vector<16x128xf32>
    %10 = math.log %9 : vector<16x128xf32>
    %cst_4 = arith.constant 5.000000e-01 : f32
    %11 = vector.broadcast %cst_4 : f32 to vector<16x128xf32>
    %12 = arith.mulf %11, %10 : vector<16x128xf32>
    %13 = arith.truncf %12 : vector<16x128xf32> to vector<16x128xbf16>
    %c0_5 = arith.constant 0 : index
    %c0_6 = arith.constant 0 : index
    %14 = vector.load %arg3[%c0_5, %c0_6] : memref<128x128xbf16, #tpu.memory_space<vmem>>, vector<128x128xbf16>
    %cst_7 = arith.constant dense<0.000000e+00> : vector<16x128xf32>
    %15 = tpu.matmul %13, %14, %cst_7 {dimension_numbers = #tpu.dot_dimension_numbers<[1], [0], [0], [1], [0, 0, 1, 1], [], []>} : vector<16x128xbf16>, vector<128x128xbf16>, vector<16x128xf32> -> vector<16x128xf32>
    %c0_8 = arith.constant 0 : index
    %c0_9 = arith.constant 0 : index
    %16 = vector.load %arg4[%c0_8, %c0_9] : memref<1x128xf32, #tpu.memory_space<vmem>>, vector<1x128xf32>
    %17 = vector.broadcast %16 : vector<1x128xf32> to vector<16x128xf32>
    %18 = arith.addf %15, %17 : vector<16x128xf32>
    %cst_10 = arith.constant 0.000000e+00 : f32
    %19 = vector.broadcast %cst_10 : f32 to vector<16x128xf32>
    %20 = arith.maximumf %18, %19 : vector<16x128xf32>
    %21 = arith.truncf %20 : vector<16x128xf32> to vector<16x128xbf16>
    %c0_11 = arith.constant 0 : index
    %c0_12 = arith.constant 0 : index
    %22 = vector.load %arg5[%c0_11, %c0_12] : memref<128x128xbf16, #tpu.memory_space<vmem>>, vector<128x128xbf16>
    %cst_13 = arith.constant dense<0.000000e+00> : vector<16x128xf32>
    %23 = tpu.matmul %21, %22, %cst_13 {dimension_numbers = #tpu.dot_dimension_numbers<[1], [0], [0], [1], [0, 0, 1, 1], [], []>} : vector<16x128xbf16>, vector<128x128xbf16>, vector<16x128xf32> -> vector<16x128xf32>
    %c0_14 = arith.constant 0 : index
    %c0_15 = arith.constant 0 : index
    %24 = vector.load %arg6[%c0_14, %c0_15] : memref<1x128xf32, #tpu.memory_space<vmem>>, vector<1x128xf32>
    %25 = vector.broadcast %24 : vector<1x128xf32> to vector<16x128xf32>
    %26 = arith.addf %23, %25 : vector<16x128xf32>
    %27 = arith.negf %26 : vector<16x128xf32>
    %28 = math.exp %27 : vector<16x128xf32>
    %cst_16 = arith.constant 1.000000e+00 : f32
    %29 = vector.broadcast %cst_16 : f32 to vector<16x128xf32>
    %30 = arith.addf %29, %28 : vector<16x128xf32>
    %31 = arith.divf %29, %30 : vector<16x128xf32>
    %32 = arith.truncf %31 : vector<16x128xf32> to vector<16x128xbf16>
    %c0_17 = arith.constant 0 : index
    %c0_18 = arith.constant 0 : index
    %33 = vector.load %arg7[%c0_17, %c0_18] : memref<16x128xbf16, #tpu.memory_space<vmem>>, vector<16x128xbf16>
    tpu.vector_store %arg7[%c0_17, %c0_18], %32 {strides = array<i32>} : memref<16x128xbf16, #tpu.memory_space<vmem>>, vector<16x128xbf16>,
    return
  }
  func.func @transform_0(%arg0: i32) -> (i32, i32) {
    %c0_i32 = arith.constant 0 : i32
    %c0_i32_0 = arith.constant 0 : i32
    return %arg0, %c0_i32 : i32, i32
  }
  func.func @transform_1(%arg0: i32) -> (i32, i32) {
    %c0_i32 = arith.constant 0 : i32
    %c0_i32_0 = arith.constant 0 : i32
    %c0_i32_1 = arith.constant 0 : i32
    return %c0_i32, %c0_i32_0 : i32, i32
  }
  func.func @transform_2(%arg0: i32) -> (i32, i32) {
    %c0_i32 = arith.constant 0 : i32
    %c0_i32_0 = arith.constant 0 : i32
    %c0_i32_1 = arith.constant 0 : i32
    return %c0_i32, %c0_i32_0 : i32, i32
  }
  func.func @transform_3(%arg0: i32) -> (i32, i32) {
    %c0_i32 = arith.constant 0 : i32
    %c0_i32_0 = arith.constant 0 : i32
    %c0_i32_1 = arith.constant 0 : i32
    return %c0_i32, %c0_i32_0 : i32, i32
  }
  func.func @transform_4(%arg0: i32) -> (i32, i32) {
    %c0_i32 = arith.constant 0 : i32
    %c0_i32_0 = arith.constant 0 : i32
    %c0_i32_1 = arith.constant 0 : i32
    return %c0_i32, %c0_i32_0 : i32, i32
  }
  func.func @transform_5(%arg0: i32) -> (i32, i32) {
    %c0_i32 = arith.constant 0 : i32
    %c0_i32_0 = arith.constant 0 : i32
    %c0_i32_1 = arith.constant 0 : i32
    return %c0_i32, %c0_i32_0 : i32, i32
  }
  func.func @transform_6(%arg0: i32) -> (i32, i32) {
    %c0_i32 = arith.constant 0 : i32
    %c0_i32_0 = arith.constant 0 : i32
    return %arg0, %c0_i32 : i32, i32
  }
}

</mosaic_0001>

<llo_original>
// kernel: _forward.1
$region0: #{_forward.1}
  #allocation0 [shape = 'u32[]', space=smem, size = 0x4, offset = 0x4, fixed_abs, tag = 'smem constant byte address 0x4 - core index']
  #allocation1 [shape = 'u32[144,128]{1,0:T(1,128)}', space=vmem, size = 0x12000, scoped, tag = 'internal scratch']
  %s0 = inlined_call_operand.vmem [shape: bf16[32,64], index: 0, kind: input, shape index: {}]
  %s1 = inlined_call_operand.vmem [shape: bf16[64,256], index: 1, kind: input, shape index: {}]
  %s2 = inlined_call_operand.vmem [shape: bf16[128,128], index: 2, kind: input, shape index: {}]
  %s3 = inlined_call_operand.vmem [shape: f32[1,128], index: 3, kind: input, shape index: {}, may-alias: {3,5}]
  %s4 = inlined_call_operand.vmem [shape: bf16[128,128], index: 4, kind: input, shape index: {}]
  %s5 = inlined_call_operand.vmem [shape: f32[1,128], index: 5, kind: input, shape index: {}, may-alias: {3,5}]
  %s6 = inlined_call_operand.vmem [shape: bf16[32,128], index: 6, kind: output, shape index: {}]
  %s7 = sld [smem:[#allocation0]]
  $region57: #{_forward.1} parent=0
    _
  %s9 = ssub.s32 1, %s7
  %s10 = scalar_select 0, %s9, %s7
  loop: start=0, step=1, limit=4
  $region2: #{_forward.1} parent=0 // loop_pre_header
    _
  $region3: #{_forward.1} parent=0 // loop_header
    %s12 = sphi 0, %s16
    %p13 = scmp.ge.s32.totalorder %s12, 4
    %s22 = sphi 0, %s24
    %s25 = sphi 0, %s22
    %s26 = sphi 0, %s25
    %s42 = sphi 0, %s26
    %s46 = sphi 0, %s46
    %s48 = sphi 0, %s46
    %s49 = sphi 0, %s48
    %s63 = sphi 0, %s49
    %s67 = sphi 0, %s67
    %s69 = sphi 0, %s67
    %s70 = sphi 0, %s69
    %s84 = sphi 0, %s70
    %s88 = sphi 0, %s88
    %s90 = sphi 0, %s88
    %s91 = sphi 0, %s90
    %s105 = sphi 0, %s91
    %s109 = sphi 0, %s109
    %s111 = sphi 0, %s109
    %s112 = sphi 0, %s111
    %s126 = sphi 0, %s112
    %s130 = sphi 0, %s130
    %s132 = sphi 0, %s130
    %s133 = sphi 0, %s132
    %s147 = sphi 0, %s133
    %s153 = sphi 0, %s155
    %s156 = sphi 0, %s153
    %s157 = sphi 0, %s156
    %s173 = sphi 0, %s157
  $region4: #{_forward.1} parent=0 // loop_header_branch
    %15 = sbr.rel (%p13) target = $region8
  $region5: #{_forward.1} parent=0 // loop_body
    %s17 = ssub.s32 %s12, 1
    %s18 = ssub.s32 %s12, 2
    %s19 = sadd.s32 %s12, 1
    %s20 = ssub.s32 %s12, %s19
    %p21 = scmp.eq.s32.totalorder %s20, 0
    %s23 = sadd.s32 %s22, 1
    %s24 = scalar_select %p21, %s22, %s23
    %p27 = pneg %p21
    %p28 = scmp.eq.s32.totalorder %s12, 1
    %p29 = por %p27, %p28
    %p30 = scmp.ne.s32.totalorder %s22, %s25
    %p31 = scmp.eq.s32.totalorder %s12, 0
    %p32 = por %p30, %p31
    %p33 = scmp.ne.s32.totalorder %s22, %s25
    %p34 = scmp.eq.s32.totalorder %s17, 1
    %p35 = por %p33, %p34
    %p36 = scmp.ne.s32.totalorder %s25, %s26
    %p37 = scmp.eq.s32.totalorder %s17, 0
    %p38 = por %p36, %p37
    %p39 = scmp.ne.s32.totalorder %s25, %s26
    %p40 = scmp.eq.s32.totalorder %s18, 1
    %p41 = por %p39, %p40
    %p43 = scmp.ne.s32.totalorder %s26, %s42
    %p44 = scmp.eq.s32.totalorder %s18, 0
    %p45 = por %p43, %p44
    %s47 = sadd.s32 %s46, 1
    %p50 = scmp.eq.s32.totalorder %s12, 1
    %p51 = scmp.ne.s32.totalorder %s46, %s48
    %p52 = scmp.eq.s32.totalorder %s12, 0
    %p53 = por %p51, %p52
    %p54 = scmp.ne.s32.totalorder %s46, %s48
    %p55 = scmp.eq.s32.totalorder %s17, 1
    %p56 = por %p54, %p55
    %p57 = scmp.ne.s32.totalorder %s48, %s49
    %p58 = scmp.eq.s32.totalorder %s17, 0
    %p59 = por %p57, %p58
    %p60 = scmp.ne.s32.totalorder %s48, %s49
    %p61 = scmp.eq.s32.totalorder %s18, 1
    %p62 = por %p60, %p61
    %p64 = scmp.ne.s32.totalorder %s49, %s63
    %p65 = scmp.eq.s32.totalorder %s18, 0
    %p66 = por %p64, %p65
    %s68 = sadd.s32 %s67, 1
    %p71 = scmp.eq.s32.totalorder %s12, 1
    %p72 = scmp.ne.s32.totalorder %s67, %s69
    %p73 = scmp.eq.s32.totalorder %s12, 0
    %p74 = por %p72, %p73
    %p75 = scmp.ne.s32.totalorder %s67, %s69
    %p76 = scmp.eq.s32.totalorder %s17, 1
    %p77 = por %p75, %p76
    %p78 = scmp.ne.s32.totalorder %s69, %s70
    %p79 = scmp.eq.s32.totalorder %s17, 0
    %p80 = por %p78, %p79
    %p81 = scmp.ne.s32.totalorder %s69, %s70
    %p82 = scmp.eq.s32.totalorder %s18, 1
    %p83 = por %p81, %p82
    %p85 = scmp.ne.s32.totalorder %s70, %s84
    %p86 = scmp.eq.s32.totalorder %s18, 0
    %p87 = por %p85, %p86
    %s89 = sadd.s32 %s88, 1
    %p92 = scmp.eq.s32.totalorder %s12, 1
    %p93 = scmp.ne.s32.totalorder %s88, %s90
    %p94 = scmp.eq.s32.totalorder %s12, 0
    %p95 = por %p93, %p94
    %p96 = scmp.ne.s32.totalorder %s88, %s90
    %p97 = scmp.eq.s32.totalorder %s17, 1
    %p98 = por %p96, %p97
    %p99 = scmp.ne.s32.totalorder %s90, %s91
    %p100 = scmp.eq.s32.totalorder %s17, 0
    %p101 = por %p99, %p100
    %p102 = scmp.ne.s32.totalorder %s90, %s91
    %p103 = scmp.eq.s32.totalorder %s18, 1
    %p104 = por %p102, %p103
    %p106 = scmp.ne.s32.totalorder %s91, %s105
    %p107 = scmp.eq.s32.totalorder %s18, 0
    %p108 = por %p106, %p107
    %s110 = sadd.s32 %s109, 1
    %p113 = scmp.eq.s32.totalorder %s12, 1
    %p114 = scmp.ne.s32.totalorder %s109, %s111
    %p115 = scmp.eq.s32.totalorder %s12, 0
    %p116 = por %p114, %p115
    %p117 = scmp.ne.s32.totalorder %s109, %s111
    %p118 = scmp.eq.s32.totalorder %s17, 1
    %p119 = por %p117, %p118
    %p120 = scmp.ne.s32.totalorder %s111, %s112
    %p121 = scmp.eq.s32.totalorder %s17, 0
    %p122 = por %p120, %p121
    %p123 = scmp.ne.s32.totalorder %s111, %s112
    %p124 = scmp.eq.s32.totalorder %s18, 1
    %p125 = por %p123, %p124
    %p127 = scmp.ne.s32.totalorder %s112, %s126
    %p128 = scmp.eq.s32.totalorder %s18, 0
    %p129 = por %p127, %p128
    %s131 = sadd.s32 %s130, 1
    %p134 = scmp.eq.s32.totalorder %s12, 1
    %p135 = scmp.ne.s32.totalorder %s130, %s132
    %p136 = scmp.eq.s32.totalorder %s12, 0
    %p137 = por %p135, %p136
    %p138 = scmp.ne.s32.totalorder %s130, %s132
    %p139 = scmp.eq.s32.totalorder %s17, 1
    %p140 = por %p138, %p139
    %p141 = scmp.ne.s32.totalorder %s132, %s133
    %p142 = scmp.eq.s32.totalorder %s17, 0
    %p143 = por %p141, %p142
    %p144 = scmp.ne.s32.totalorder %s132, %s133
    %p145 = scmp.eq.s32.totalorder %s18, 1
    %p146 = por %p144, %p145
    %p148 = scmp.ne.s32.totalorder %s133, %s147
    %p149 = scmp.eq.s32.totalorder %s18, 0
    %p150 = por %p148, %p149
    %s151 = ssub.s32 %s12, %s19
    %p152 = scmp.eq.s32.totalorder %s151, 0
    %s154 = sadd.s32 %s153, 1
    %s155 = scalar_select %p152, %s153, %s154
    %p158 = pneg %p152
    %p159 = scmp.eq.s32.totalorder %s12, 1
    %p160 = por %p158, %p159
    %p161 = scmp.ne.s32.totalorder %s153, %s156
    %p162 = scmp.eq.s32.totalorder %s12, 0
    %p163 = por %p161, %p162
    %p164 = scmp.ne.s32.totalorder %s153, %s156
    %p165 = scmp.eq.s32.totalorder %s17, 1
    %p166 = por %p164, %p165
    %p167 = scmp.ne.s32.totalorder %s156, %s157
    %p168 = scmp.eq.s32.totalorder %s17, 0
    %p169 = por %p167, %p168
    %p170 = scmp.ne.s32.totalorder %s156, %s157
    %p171 = scmp.eq.s32.totalorder %s18, 1
    %p172 = por %p170, %p171
    %p174 = scmp.ne.s32.totalorder %s157, %s173
    %p175 = scmp.eq.s32.totalorder %s18, 0
    %p176 = por %p174, %p175
    %p177 = scmp.le.s32.totalorder 1, %s12
    %p178 = scmp.lt.s32.totalorder %s12, 3
    %p179 = pnand %p177, %p178
    %p180 = pneg %p179
    // Predicated region
    $region9: #{_forward.1} parent=5 // pred_check
      _
    $region10: #{_forward.1} parent=5 // pred_check_branch
      %182 = sbr.rel (%p179) target = $region12
    $region11: #{_forward.1} parent=5 // pred_region
      %s183 = ssub.s32 %s12, 1
      // Predicated region
      $region13: #{_forward.1} parent=11 // pred_check
        %p184 = pneg %p59
      $region14: #{_forward.1} parent=11 // pred_check_branch
        %186 = sbr.rel (%p184) target = $region16
      $region15: #{_forward.1} parent=11 // pred_region
        _
      $region16: #{_forward.1} parent=11 // pred_fallthru
        _
      // Predicated region
      $region17: #{_forward.1} parent=11 // pred_check
        %p187 = pneg %p80
      $region18: #{_forward.1} parent=11 // pred_check_branch
        %189 = sbr.rel (%p187) target = $region20
      $region19: #{_forward.1} parent=11 // pred_region
        _
      $region20: #{_forward.1} parent=11 // pred_fallthru
        _
      // Predicated region
      $region21: #{_forward.1} parent=11 // pred_check
        %p190 = pneg %p101
      $region22: #{_forward.1} parent=11 // pred_check_branch
        %192 = sbr.rel (%p190) target = $region24
      $region23: #{_forward.1} parent=11 // pred_region
        _
      $region24: #{_forward.1} parent=11 // pred_fallthru
        _
      // Predicated region
      $region25: #{_forward.1} parent=11 // pred_check
        %p193 = pneg %p122
      $region26: #{_forward.1} parent=11 // pred_check_branch
        %195 = sbr.rel (%p193) target = $region28
      $region27: #{_forward.1} parent=11 // pred_region
        _
      $region28: #{_forward.1} parent=11 // pred_fallthru
        _
      // Predicated region
      $region29: #{_forward.1} parent=11 // pred_check
        %p196 = pneg %p143
      $region30: #{_forward.1} parent=11 // pred_check_branch
        %198 = sbr.rel (%p196) target = $region32
      $region31: #{_forward.1} parent=11 // pred_region
        _
      $region32: #{_forward.1} parent=11 // pred_fallthru
        _
    $region12: #{_forward.1} parent=5 // pred_fallthru
      _
    %p199 = scmp.lt.s32.totalorder %s12, 2
    // Predicated region
    $region33: #{_forward.1} parent=5 // pred_check
      %p200 = pneg %p199
    $region34: #{_forward.1} parent=5 // pred_check_branch
      %202 = sbr.rel (%p200) target = $region36
    $region35: #{_forward.1} parent=5 // pred_region
      // Predicated region
      $region37: #{_forward.1} parent=35 // pred_check
        %p203 = pneg %p32
      $region38: #{_forward.1} parent=35 // pred_check_branch
        %205 = sbr.rel (%p203) target = $region40
      $region39: #{_forward.1} parent=35 // pred_region
        %s206 = smul.u32 2, %s12
        %p207 = scmp.lt.s32.totalorder %s206, 3
        %s208 = scalar_select %p207, %s206, 3
        %s209 = smul.addr %s208, 4
        %s210 = scalar_lea.vmem %s0, %s209
        %s211 = smul.u32 2, %s12
      $region40: #{_forward.1} parent=35 // pred_fallthru
        _
    $region36: #{_forward.1} parent=5 // pred_fallthru
      _
    %p212 = scmp.le.s32.totalorder 1, %s12
    %p213 = scmp.lt.s32.totalorder %s12, 3
    %p214 = pnand %p212, %p213
    %p215 = pneg %p214
    // Predicated region
    $region41: #{_forward.1} parent=5 // pred_check
      _
    $region42: #{_forward.1} parent=5 // pred_check_branch
      %217 = sbr.rel (%p214) target = $region44
    $region43: #{_forward.1} parent=5 // pred_region
      %s218 = ssub.s32 %s12, 1
      %s219 = smul.u32 2, %s17
      %p220 = scmp.lt.s32.totalorder %s219, 3
      %s221 = scalar_select %p220, %s219, 3
      %s222 = smul.addr %s221, 4
      %s223 = scalar_lea.vmem %s0, %s222
      %p224 = pneg %p38
      %p225 = pneg %p35
      %p226 = pneg %p59
      %p227 = pneg %p56
      %p228 = pneg %p80
      %p229 = pneg %p77
      %p230 = pneg %p101
      %p231 = pneg %p98
      %p232 = pneg %p122
      %p233 = pneg %p119
      %p234 = pneg %p143
      %p235 = pneg %p140
      %p236 = pneg %p169
      %p237 = pneg %p166
      %s238 = smul.u32 2, %s17
      %p239 = scmp.lt.s32.totalorder %s238, 3
      %s240 = scalar_select %p239, %s238, 3
      %s241 = smul.addr %s240, 4
      %s242 = scalar_lea.vmem %s6, %s241
      %s243 = smul.u32 2, %s17
      %p244 = scmp.lt.s32.totalorder %s243, 3
      %s245 = scalar_select %p244, %s243, 3
      %s246 = smul.addr %s245, 4
      %s247 = scalar_lea.vmem %s0, %s246
      %s248 = smul.u32 2, %s17
      %s249 = smul.u32 2, %s17
      %p250 = scmp.lt.s32.totalorder %s249, 3
      %s251 = scalar_select %p250, %s249, 3
      %s252 = smul.addr %s251, 4
      %s253 = scalar_lea.vmem %s6, %s252
      %s254 = smul.u32 2, %s17
      %v256 = vld [vmem:[%s247] sm:$0xf]
      %v257 = vld [vmem:[%s247 + $0x4] sm:$0xf]
      %v258 = vld [vmem:[%s1] sm:$0xff]
      %v259 = vld [vmem:[%s1 + $0x8] sm:$0xff]
      %v260 = vld [vmem:[%s1 + $0x10] sm:$0xff]
      %v261 = vld [vmem:[%s1 + $0x18] sm:$0xff]
      %v262 = vld [vmem:[%s1 + $0x20] sm:$0xff]
      %v263 = vld [vmem:[%s1 + $0x28] sm:$0xff]
      %v264 = vld [vmem:[%s1 + $0x30] sm:$0xff]
      %v265 = vld [vmem:[%s1 + $0x38] sm:$0xff]
      %v268 = vunpack.c.l.b16 %v256
      %v269 = vunpack.c.l.b16 %v257
      %v270 = vpack.c.b16 %v269, %v268
      %v279 = vunpack.c.l.b16 %v258
      %v280 = vunpack.c.h.b16 %v258
      %v281 = vunpack.c.l.b16 %v259
      %v282 = vunpack.c.h.b16 %v259
      %v283 = vunpack.c.l.b16 %v260
      %v284 = vunpack.c.h.b16 %v260
      %v285 = vunpack.c.l.b16 %v261
      %v286 = vunpack.c.h.b16 %v261
      %v287 = vunpack.c.l.b16 %v262
      %v288 = vunpack.c.h.b16 %v262
      %v289 = vunpack.c.l.b16 %v263
      %v290 = vunpack.c.h.b16 %v263
      %v291 = vunpack.c.l.b16 %v264
      %v292 = vunpack.c.h.b16 %v264
      %v293 = vunpack.c.l.b16 %v265
      %v294 = vunpack.c.h.b16 %v265
      %v295 = vpack.c.b16 %v281, %v279
      %v296 = vpack.c.b16 %v282, %v280
      %v297 = vpack.c.b16 %v285, %v283
      %v298 = vpack.c.b16 %v286, %v284
      %v299 = vpack.c.b16 %v289, %v287
      %v300 = vpack.c.b16 %v290, %v288
      %v301 = vpack.c.b16 %v293, %v291
      %v302 = vpack.c.b16 %v294, %v292
      %vm311 = vcmask 523264
      %v313 = vsel %vm311, %v270, 0
      %315 = vmatprep.subr.bf16.mxu0 %v296
      %316 = vmatpush1.bf16.msra.mxu0 %v295
      %317 = vmatprep.subr.bf16.mxu0 %v298
      %318 = vmatpush1.bf16.msra.mxu0 %v297
      %319 = vmatprep.subr.bf16.mxu0 %v300
      %320 = vmatpush1.bf16.msra.mxu0 %v299
      %321 = vmatprep.subr.bf16.mxu0 %v302
      %322 = vmatpush1.bf16.msra.mxu0 %v301
      %323 = vmatprep.subr.bf16.mxu0 0
      %324 = vmatpush1.bf16.msra.mxu0 0
      %325 = vmatprep.subr.bf16.mxu0 0
      %326 = vmatpush1.bf16.msra.mxu0 0
      %327 = vmatprep.subr.bf16.mxu0 0
      %328 = vmatpush1.bf16.msra.mxu0 0
      %329 = vmatprep.subr.bf16.mxu0 0
      %330 = vmatpush1.bf16.msra.mxu0 0
      %331 = vmatprep.subr.bf16.mxu0 0
      %332 = vmatpush1.bf16.msra.mxu0 0
      %333 = vmatprep.subr.bf16.mxu0 0
      %334 = vmatpush1.bf16.msra.mxu0 0
      %335 = vmatprep.subr.bf16.mxu0 0
      %336 = vmatpush1.bf16.msra.mxu0 0
      %337 = vmatprep.subr.bf16.mxu0 0
      %338 = vmatpush1.bf16.msra.mxu0 0
      %339 = vmatprep.subr.bf16.mxu0 0
      %340 = vmatpush1.bf16.msra.mxu0 0
      %341 = vmatprep.subr.bf16.mxu0 0
      %342 = vmatpush1.bf16.msra.mxu0 0
      %343 = vmatprep.subr.bf16.mxu0 0
      %344 = vmatpush1.bf16.msra.mxu0 0
      %345 = vmatprep.subr.bf16.mxu0 0
      %346 = vmatpush1.bf16.msra.mxu0 0
      %347 = vmatprep.mubr.bf16.mxu0 0
      %348 = vmatmul.mubr.bf16.gmra.mrb[0].mxu0 %v313
      %v349 = vpop.f32.mrb[0].mxu0
      %v350 = vadd.f32 0.0, %v349
      %v351 = vpop.f32.mrb[0].mxu0
      %v352 = vadd.f32 0.0, %v351
      %v353 = vpop.f32.mrb[0].mxu0
      %v354 = vadd.f32 0.0, %v353
      %v355 = vpop.f32.mrb[0].mxu0
      %v356 = vadd.f32 0.0, %v355
      %357 = vdwg.mxu0
      %v358 = vmul.f32 %v350, %v350
      %v359 = vmul.f32 %v354, %v354
      %v360 = vmul.f32 %v352, %v352
      %v361 = vmul.f32 %v356, %v356
      %v362 = vadd.f32 %v358, %v360
      %v363 = vadd.f32 %v359, %v361
      %v364 = vadd.f32 %v362, 1e-16
      %v365 = vadd.f32 %v363, 1e-16
      %v366 = vlog2.pop %v364
      %v367 = vmul.f32 %v366, 0.6931472
      %v368 = vlog2.pop %v365
      %v369 = vmul.f32 %v368, 0.6931472
      %v370 = vmul.f32 %v367, 0.5
      %v371 = vmul.f32 %v369, 0.5
      %v372 = vpack.c.bf16 %v371, %v370
      %v373 = vld [vmem:[%s2] sm:$0xf]
      %v374 = vld [vmem:[%s2 + $0x4] sm:$0xf]
      %v375 = vld [vmem:[%s2 + $0x8] sm:$0xf]
      %v376 = vld [vmem:[%s2 + $0xc] sm:$0xf]
      %v377 = vld [vmem:[%s2 + $0x10] sm:$0xf]
      %v378 = vld [vmem:[%s2 + $0x14] sm:$0xf]
      %v379 = vld [vmem:[%s2 + $0x18] sm:$0xf]
      %v380 = vld [vmem:[%s2 + $0x1c] sm:$0xf]
      %v381 = vld [vmem:[%s2 + $0x20] sm:$0xf]
      %v382 = vld [vmem:[%s2 + $0x24] sm:$0xf]
      %v383 = vld [vmem:[%s2 + $0x28] sm:$0xf]
      %v384 = vld [vmem:[%s2 + $0x2c] sm:$0xf]
      %v385 = vld [vmem:[%s2 + $0x30] sm:$0xf]
      %v386 = vld [vmem:[%s2 + $0x34] sm:$0xf]
      %v387 = vld [vmem:[%s2 + $0x38] sm:$0xf]
      %v388 = vld [vmem:[%s2 + $0x3c] sm:$0xf]
      %v389 = vld [vmem:[%s3] sm:$0x1]
      %v391 = vlaneseq
      %v392 = vshrl.u32 %v391, 7
      %v393 = vsub.s32 0, %v392
      %v394 = vrot.slane %v389, %v393
      %v412 = vunpack.c.l.b16 %v373
      %v413 = vunpack.c.l.b16 %v374
      %v414 = vunpack.c.l.b16 %v375
      %v415 = vunpack.c.l.b16 %v376
      %v416 = vunpack.c.l.b16 %v377
      %v417 = vunpack.c.l.b16 %v378
      %v418 = vunpack.c.l.b16 %v379
      %v419 = vunpack.c.l.b16 %v380
      %v420 = vunpack.c.l.b16 %v381
      %v421 = vunpack.c.l.b16 %v382
      %v422 = vunpack.c.l.b16 %v383
      %v423 = vunpack.c.l.b16 %v384
      %v424 = vunpack.c.l.b16 %v385
      %v425 = vunpack.c.l.b16 %v386
      %v426 = vunpack.c.l.b16 %v387
      %v427 = vunpack.c.l.b16 %v388
      %v428 = vpack.c.b16 %v413, %v412
      %v429 = vpack.c.b16 %v415, %v414
      %v430 = vpack.c.b16 %v417, %v416
      %v431 = vpack.c.b16 %v419, %v418
      %v432 = vpack.c.b16 %v421, %v420
      %v433 = vpack.c.b16 %v423, %v422
      %v434 = vpack.c.b16 %v425, %v424
      %v435 = vpack.c.b16 %v427, %v426
      %444 = vmatprep.subr.bf16.mxu0 0
      %445 = vmatpush1.bf16.msra.mxu0 %v428
      %446 = vmatprep.subr.bf16.mxu0 0
      %447 = vmatpush1.bf16.msra.mxu0 %v429
      %448 = vmatprep.subr.bf16.mxu0 0
      %449 = vmatpush1.bf16.msra.mxu0 %v430
      %450 = vmatprep.subr.bf16.mxu0 0
      %451 = vmatpush1.bf16.msra.mxu0 %v431
      %452 = vmatprep.subr.bf16.mxu0 0
      %453 = vmatpush1.bf16.msra.mxu0 %v432
      %454 = vmatprep.subr.bf16.mxu0 0
      %455 = vmatpush1.bf16.msra.mxu0 %v433
      %456 = vmatprep.subr.bf16.mxu0 0
      %457 = vmatpush1.bf16.msra.mxu0 %v434
      %458 = vmatprep.subr.bf16.mxu0 0
      %459 = vmatpush1.bf16.msra.mxu0 %v435
      %460 = vmatprep.subr.bf16.mxu0 0
      %461 = vmatpush1.bf16.msra.mxu0 0
      %462 = vmatprep.subr.bf16.mxu0 0
      %463 = vmatpush1.bf16.msra.mxu0 0
      %464 = vmatprep.subr.bf16.mxu0 0
      %465 = vmatpush1.bf16.msra.mxu0 0
      %466 = vmatprep.subr.bf16.mxu0 0
      %467 = vmatpush1.bf16.msra.mxu0 0
      %468 = vmatprep.subr.bf16.mxu0 0
      %469 = vmatpush1.bf16.msra.mxu0 0
      %470 = vmatprep.subr.bf16.mxu0 0
      %471 = vmatpush1.bf16.msra.mxu0 0
      %472 = vmatprep.subr.bf16.mxu0 0
      %473 = vmatpush1.bf16.msra.mxu0 0
      %474 = vmatprep.subr.bf16.mxu0 0
      %475 = vmatpush1.bf16.msra.mxu0 0
      %476 = vmatprep.mubr.bf16.mxu0 0
      %477 = vmatmul.mubr.bf16.gmra.mrb[0].mxu0 %v372
      %v478 = vpop.f32.mrb[0].mxu0
      %v479 = vadd.f32 %v394, %v478
      %v480 = vpop.f32.mrb[0].mxu0
      %v481 = vpop.f32.mrb[0].mxu0
      %v482 = vadd.f32 %v394, %v481
      %v483 = vpop.f32.mrb[0].mxu0
      %484 = vdwg.mxu0
      %v485 = vmax.f32 %v479, 0.0
      %v486 = vmax.f32 %v482, 0.0
      %v487 = vpack.c.bf16 %v486, %v485
      %v488 = vld [vmem:[%s4] sm:$0xf]
      %v489 = vld [vmem:[%s4 + $0x4] sm:$0xf]
      %v490 = vld [vmem:[%s4 + $0x8] sm:$0xf]
      %v491 = vld [vmem:[%s4 + $0xc] sm:$0xf]
      %v492 = vld [vmem:[%s4 + $0x10] sm:$0xf]
      %v493 = vld [vmem:[%s4 + $0x14] sm:$0xf]
      %v494 = vld [vmem:[%s4 + $0x18] sm:$0xf]
      %v495 = vld [vmem:[%s4 + $0x1c] sm:$0xf]
      %v496 = vld [vmem:[%s4 + $0x20] sm:$0xf]
      %v497 = vld [vmem:[%s4 + $0x24] sm:$0xf]
      %v498 = vld [vmem:[%s4 + $0x28] sm:$0xf]
      %v499 = vld [vmem:[%s4 + $0x2c] sm:$0xf]
      %v500 = vld [vmem:[%s4 + $0x30] sm:$0xf]
      %v501 = vld [vmem:[%s4 + $0x34] sm:$0xf]
      %v502 = vld [vmem:[%s4 + $0x38] sm:$0xf]
      %v503 = vld [vmem:[%s4 + $0x3c] sm:$0xf]
      %v504 = vld [vmem:[%s5] sm:$0x1]
      %v506 = vlaneseq
      %v507 = vshrl.u32 %v506, 7
      %v508 = vsub.s32 0, %v507
      %v509 = vrot.slane %v504, %v508
      %v527 = vunpack.c.l.b16 %v488
      %v528 = vunpack.c.l.b16 %v489
      %v529 = vunpack.c.l.b16 %v490
      %v530 = vunpack.c.l.b16 %v491
      %v531 = vunpack.c.l.b16 %v492
      %v532 = vunpack.c.l.b16 %v493
      %v533 = vunpack.c.l.b16 %v494
      %v534 = vunpack.c.l.b16 %v495
      %v535 = vunpack.c.l.b16 %v496
      %v536 = vunpack.c.l.b16 %v497
      %v537 = vunpack.c.l.b16 %v498
      %v538 = vunpack.c.l.b16 %v499
      %v539 = vunpack.c.l.b16 %v500
      %v540 = vunpack.c.l.b16 %v501
      %v541 = vunpack.c.l.b16 %v502
      %v542 = vunpack.c.l.b16 %v503
      %v543 = vpack.c.b16 %v528, %v527
      %v544 = vpack.c.b16 %v530, %v529
      %v545 = vpack.c.b16 %v532, %v531
      %v546 = vpack.c.b16 %v534, %v533
      %v547 = vpack.c.b16 %v536, %v535
      %v548 = vpack.c.b16 %v538, %v537
      %v549 = vpack.c.b16 %v540, %v539
      %v550 = vpack.c.b16 %v542, %v541
      %559 = vmatprep.subr.bf16.mxu0 0
      %560 = vmatpush1.bf16.msra.mxu0 %v543
      %561 = vmatprep.subr.bf16.mxu0 0
      %562 = vmatpush1.bf16.msra.mxu0 %v544
      %563 = vmatprep.subr.bf16.mxu0 0
      %564 = vmatpush1.bf16.msra.mxu0 %v545
      %565 = vmatprep.subr.bf16.mxu0 0
      %566 = vmatpush1.bf16.msra.mxu0 %v546
      %567 = vmatprep.subr.bf16.mxu0 0
      %568 = vmatpush1.bf16.msra.mxu0 %v547
      %569 = vmatprep.subr.bf16.mxu0 0
      %570 = vmatpush1.bf16.msra.mxu0 %v548
      %571 = vmatprep.subr.bf16.mxu0 0
      %572 = vmatpush1.bf16.msra.mxu0 %v549
      %573 = vmatprep.subr.bf16.mxu0 0
      %574 = vmatpush1.bf16.msra.mxu0 %v550
      %575 = vmatprep.subr.bf16.mxu0 0
      %576 = vmatpush1.bf16.msra.mxu0 0
      %577 = vmatprep.subr.bf16.mxu0 0
      %578 = vmatpush1.bf16.msra.mxu0 0
      %579 = vmatprep.subr.bf16.mxu0 0
      %580 = vmatpush1.bf16.msra.mxu0 0
      %581 = vmatprep.subr.bf16.mxu0 0
      %582 = vmatpush1.bf16.msra.mxu0 0
      %583 = vmatprep.subr.bf16.mxu0 0
      %584 = vmatpush1.bf16.msra.mxu0 0
      %585 = vmatprep.subr.bf16.mxu0 0
      %586 = vmatpush1.bf16.msra.mxu0 0
      %587 = vmatprep.subr.bf16.mxu0 0
      %588 = vmatpush1.bf16.msra.mxu0 0
      %589 = vmatprep.subr.bf16.mxu0 0
      %590 = vmatpush1.bf16.msra.mxu0 0
      %591 = vmatprep.mubr.bf16.mxu0 0
      %592 = vmatmul.mubr.bf16.gmra.mrb[0].mxu0 %v487
      %v593 = vpop.f32.mrb[0].mxu0
      %v594 = vadd.f32 %v509, %v593
      %v595 = vpop.f32.mrb[0].mxu0
      %v596 = vpop.f32.mrb[0].mxu0
      %v597 = vadd.f32 %v509, %v596
      %v598 = vpop.f32.mrb[0].mxu0
      %599 = vdwg.mxu0
      %v600 = vxor.u32 %v594, 2147483648
      %v601 = vxor.u32 %v597, 2147483648
      %v602 = vmul.f32 %v600, 1.442695
      %v603 = vpow.pop %v602
      %v604 = vmul.f32 %v601, 1.442695
      %v605 = vpow.pop %v604
      %v606 = vadd.f32 %v603, 1.0
      %v607 = vadd.f32 %v605, 1.0
      %v608 = vrcp.pop %v606
      %v609 = vmul.f32 1.0, %v608
      %v610 = vrcp.pop %v607
      %v611 = vmul.f32 1.0, %v610
      %v612 = vpack.c.bf16 %v611, %v609
      %v614 = vunpack.c.l.b16 %v612
      %v615 = vunpack.c.h.b16 %v612
      %v616 = vpack.c.b16 %v614, %v614
      %v617 = vpack.c.b16 %v615, %v615
      %620 = vst [vmem:[%s253] sm:$0xf] %v616
      %621 = vst [vmem:[%s253 + $0x4] sm:$0xf] %v617
      %s622 = smul.u32 2, %s17
      %p623 = scmp.lt.s32.totalorder %s622, 3
      %s624 = scalar_select %p623, %s622, 3
      %s625 = smul.addr %s624, 4
      %s626 = scalar_lea.vmem %s6, %s625
      // Predicated region
      $region45: #{_forward.1} parent=43 // pred_check
        %p627 = pneg %p166
      $region46: #{_forward.1} parent=43 // pred_check_branch
        %629 = sbr.rel (%p627) target = $region48
      $region47: #{_forward.1} parent=43 // pred_region
        %s630 = smul.u32 2, %s17
      $region48: #{_forward.1} parent=43 // pred_fallthru
        _
    $region44: #{_forward.1} parent=5 // pred_fallthru
      _
    %p631 = scmp.le.s32.totalorder 2, %s12
    // Predicated region
    $region49: #{_forward.1} parent=5 // pred_check
      %p632 = pneg %p631
    $region50: #{_forward.1} parent=5 // pred_check_branch
      %634 = sbr.rel (%p632) target = $region52
    $region51: #{_forward.1} parent=5 // pred_region
      %s635 = ssub.s32 %s12, 2
      // Predicated region
      $region53: #{_forward.1} parent=51 // pred_check
        %p636 = pneg %p172
      $region54: #{_forward.1} parent=51 // pred_check_branch
        %638 = sbr.rel (%p636) target = $region56
      $region55: #{_forward.1} parent=51 // pred_region
        %s639 = smul.u32 2, %s18
        %p640 = scmp.lt.s32.totalorder %s639, 3
        %s641 = scalar_select %p640, %s639, 3
        %s642 = smul.addr %s641, 4
        %s643 = scalar_lea.vmem %s6, %s642
      $region56: #{_forward.1} parent=51 // pred_fallthru
        _
    $region52: #{_forward.1} parent=5 // pred_fallthru
      _
  $region6: #{_forward.1} parent=0 // loop_footer
    %s16 = sadd.s32 1, %s12
  $region7: #{_forward.1} parent=0 // loop_footer_branch
    %11 = sbr.rel target = $region3
  $region8: #{_forward.1} parent=0 // loop_exit
    _

</llo_original>
